<compile_context>
chip_gen: v6e
topology: v6e:2x2x1
jax: 0.10.0
libtpu: 0.0.40
codegen_flags: <defaults>
</compile_context>

<pallas_src>
import jax
import jax.numpy as jnp
from jax.experimental import pallas as pl
from jax.experimental.pallas import tpu as pltpu


def fused_kernel(xt_ref, w1_ref, w2t_ref, beff_ref, o_ref):
    # xt_ref:   (K, M)  one batch element of x, pre-transposed in the wrapper
    # w1_ref:   (H, K)  linear1 weight (torch layout: out_features x in_features)
    # w2t_ref:  (M, O)  linear2 weight pre-transposed (W2^T)
    # beff_ref: (H, O)  fused bias = outer(b1, W2.sum(axis=1)) + b2
    # o_ref:    (H, O)
    a = jnp.dot(w1_ref[...], xt_ref[...],
                preferred_element_type=jnp.float32)          # (H, M)
    z = jnp.dot(a, w2t_ref[...],
                preferred_element_type=jnp.float32)          # (H, O)
    o_ref[...] = (z + beff_ref[...]).astype(o_ref.dtype)


def model_forward(x, w1, b1, w2, b2):
    B, M, K = x.shape
    H = w1.shape[0]          # out_features of linear1
    O = w2.shape[0]          # out_features of linear2 (applied along M after permute)

    # One-time wrapper-side layout/bias fusion (tiny XLA ops, outside the kernel).
    xt = jnp.swapaxes(x, 1, 2)                                   # (B, K, M)
    w2t = w2.T                                                   # (M, O)
    beff = jnp.outer(b1, jnp.sum(w2, axis=1)) + b2[None, :]      # (H, O)

    return pl.pallas_call(
        fused_kernel,
        out_shape=jax.ShapeDtypeStruct((B, H, O), x.dtype),
        grid_spec=pltpu.PrefetchScalarGridSpec(
            num_scalar_prefetch=0,
            grid=(B,),
            in_specs=[
                pl.BlockSpec((pl.Squeezed(), K, M), lambda b: (b, 0, 0)),  # x^T, one batch
                pl.BlockSpec((H, K), lambda b: (0, 0)),                    # W1 (full)
                pl.BlockSpec((M, O), lambda b: (0, 0)),                    # W2^T (full)
                pl.BlockSpec((H, O), lambda b: (0, 0)),                    # fused bias (full)
            ],
            out_specs=pl.BlockSpec((pl.Squeezed(), H, O), lambda b: (b, 0, 0)),
        ),
        compiler_params=pltpu.CompilerParams(
            dimension_semantics=("parallel",),
        ),
    )(xt, w1, w2t, beff)


def reference_forward(x, w1, b1, w2, b2):
    y = jnp.einsum("bmk,hk->bmh", x, w1) + b1                 # linear1
    y = jnp.transpose(y, (0, 2, 1))                           # permute(0, 2, 1)
    z = jnp.einsum("bhm,om->bho", y, w2) + b2                 # linear2
    return z


if __name__ == "__main__":
    key = jax.random.PRNGKey(0)
    kx, kw1, kb1, kw2, kb2 = jax.random.split(key, 5)

    # Shapes matching the PyTorch module: x1 = torch.randn(1, 2, 2), Linear(2, 2) x2
    x = jax.random.normal(kx, (1, 2, 2), dtype=jnp.float32)
    w1 = jax.random.normal(kw1, (2, 2), dtype=jnp.float32) * 0.5
    b1 = jax.random.normal(kb1, (2,), dtype=jnp.float32) * 0.5
    w2 = jax.random.normal(kw2, (2, 2), dtype=jnp.float32) * 0.5
    b2 = jax.random.normal(kb2, (2,), dtype=jnp.float32) * 0.5

    out = model_forward(x, w1, b1, w2, b2)
    out = jax.block_until_ready(out)

    ref = reference_forward(x, w1, b1, w2, b2)
    assert out.shape == (1, 2, 2), out.shape
    assert jnp.allclose(out, ref, atol=1e-5, rtol=1e-5), (out, ref)

    print("KERNEL_OK")
</pallas_src>

<mosaic_0001>
module attributes {stable_mosaic.version = 11 : i64} {
  func.func @fused_kernel(%arg0: i32, %arg1: memref<1x2x2xf32, #tpu.memory_space<vmem>>, %arg2: memref<2x2xf32, #tpu.memory_space<vmem>>, %arg3: memref<2x2xf32, #tpu.memory_space<vmem>>, %arg4: memref<2x2xf32, #tpu.memory_space<vmem>>, %arg5: memref<1x2x2xf32, #tpu.memory_space<vmem>>) attributes {dimension_semantics = [#tpu.dimension_semantics<parallel>], iteration_bounds = array<i64: 1>, scalar_prefetch = 0 : i64, scratch_operands = 0 : i64, tpu.core_type = #tpu.core_type<tc>, window_params = [{transform_indices = @transform_0, window_bounds = array<i64: 1, 2, 2>}, {pipeline_mode = #tpu.pipeline_mode<synchronous>, transform_indices = @transform_1, window_bounds = array<i64: 2, 2>}, {pipeline_mode = #tpu.pipeline_mode<synchronous>, transform_indices = @transform_2, window_bounds = array<i64: 2, 2>}, {pipeline_mode = #tpu.pipeline_mode<synchronous>, transform_indices = @transform_3, window_bounds = array<i64: 2, 2>}, {transform_indices = @transform_4, window_bounds = array<i64: 1, 2, 2>}]} {
    %c0 = arith.constant 0 : index
    %c0_0 = arith.constant 0 : index
    %0 = vector.load %arg2[%c0, %c0_0] : memref<2x2xf32, #tpu.memory_space<vmem>>, vector<2x2xf32>
    %c0_1 = arith.constant 0 : index
    %c0_2 = arith.constant 0 : index
    %c0_3 = arith.constant 0 : index
    %1 = vector.load %arg1[%c0_1, %c0_2, %c0_3] : memref<1x2x2xf32, #tpu.memory_space<vmem>>, vector<1x2x2xf32>
    %2 = vector.shape_cast %1 : vector<1x2x2xf32> to vector<2x2xf32>
    %cst = arith.constant dense<0.000000e+00> : vector<2x2xf32>
    %3 = tpu.matmul %0, %2, %cst {dimension_numbers = #tpu.dot_dimension_numbers<[1], [0], [0], [1], [0, 0, 1, 1], [], []>} : vector<2x2xf32>, vector<2x2xf32>, vector<2x2xf32> -> vector<2x2xf32>
    %c0_4 = arith.constant 0 : index
    %c0_5 = arith.constant 0 : index
    %4 = vector.load %arg3[%c0_4, %c0_5] : memref<2x2xf32, #tpu.memory_space<vmem>>, vector<2x2xf32>
    %cst_6 = arith.constant dense<0.000000e+00> : vector<2x2xf32>
    %5 = tpu.matmul %3, %4, %cst_6 {dimension_numbers = #tpu.dot_dimension_numbers<[1], [0], [0], [1], [0, 0, 1, 1], [], []>} : vector<2x2xf32>, vector<2x2xf32>, vector<2x2xf32> -> vector<2x2xf32>
    %c0_7 = arith.constant 0 : index
    %c0_8 = arith.constant 0 : index
    %6 = vector.load %arg4[%c0_7, %c0_8] : memref<2x2xf32, #tpu.memory_space<vmem>>, vector<2x2xf32>
    %7 = arith.addf %5, %6 : vector<2x2xf32>
    %c0_9 = arith.constant 0 : index
    %c0_10 = arith.constant 0 : index
    %c0_11 = arith.constant 0 : index
    %8 = vector.load %arg5[%c0_9, %c0_10, %c0_11] : memref<1x2x2xf32, #tpu.memory_space<vmem>>, vector<1x2x2xf32>
    %9 = vector.shape_cast %8 : vector<1x2x2xf32> to vector<2x2xf32>
    %10 = vector.shape_cast %7 : vector<2x2xf32> to vector<1x2x2xf32>
    tpu.vector_store %arg5[%c0_9, %c0_10, %c0_11], %10 {strides = array<i32>} : memref<1x2x2xf32, #tpu.memory_space<vmem>>, vector<1x2x2xf32>,
    return
  }
  func.func @transform_0(%arg0: i32) -> (i32, i32, i32) {
    %c0_i32 = arith.constant 0 : i32
    %c0_i32_0 = arith.constant 0 : i32
    %c0_i32_1 = arith.constant 0 : i32
    return %arg0, %c0_i32, %c0_i32_0 : i32, i32, i32
  }
  func.func @transform_1(%arg0: i32) -> (i32, i32) {
    %c0_i32 = arith.constant 0 : i32
    %c0_i32_0 = arith.constant 0 : i32
    %c0_i32_1 = arith.constant 0 : i32
    return %c0_i32, %c0_i32_0 : i32, i32
  }
  func.func @transform_2(%arg0: i32) -> (i32, i32) {
    %c0_i32 = arith.constant 0 : i32
    %c0_i32_0 = arith.constant 0 : i32
    %c0_i32_1 = arith.constant 0 : i32
    return %c0_i32, %c0_i32_0 : i32, i32
  }
  func.func @transform_3(%arg0: i32) -> (i32, i32) {
    %c0_i32 = arith.constant 0 : i32
    %c0_i32_0 = arith.constant 0 : i32
    %c0_i32_1 = arith.constant 0 : i32
    return %c0_i32, %c0_i32_0 : i32, i32
  }
  func.func @transform_4(%arg0: i32) -> (i32, i32, i32) {
    %c0_i32 = arith.constant 0 : i32
    %c0_i32_0 = arith.constant 0 : i32
    %c0_i32_1 = arith.constant 0 : i32
    return %arg0, %c0_i32, %c0_i32_0 : i32, i32, i32
  }
}

</mosaic_0001>

<llo_original>
// kernel: tpu_custom_call.1
$region0: #{tpu_custom_call.1}
  #allocation0 [shape = 'u32[]', space=smem, size = 0x4, offset = 0x4, fixed_abs, tag = 'smem constant byte address 0x4 - core index']
  #allocation1 [shape = 'u32[144,128]{1,0:T(1,128)}', space=vmem, size = 0x12000, scoped, tag = 'internal scratch']
  %s0 = inlined_call_operand.hbm [shape: f32[1,2,2], index: 0, kind: input, shape index: {}]
  %s1 = inlined_call_operand.hbm [shape: f32[2,2], index: 1, kind: input, shape index: {}]
  %s2 = inlined_call_operand.vmem [shape: f32[2,2], index: 2, kind: input, shape index: {}]
  %s3 = inlined_call_operand.vmem [shape: f32[2,2], index: 3, kind: input, shape index: {}]
  %s4 = inlined_call_operand.hbm [shape: f32[1,2,2], index: 4, kind: output, shape index: {}]
  %s5 = sld [smem:[#allocation0]]
  $region34: #{tpu_custom_call.1} parent=0
    _
  %s7 = ssub.s32 1, %s5
  %s8 = scalar_select 0, %s7, %s5
  $region1: #{tpu_custom_call.1} parent=0
    #allocation2 [shape = 'u8[1024]{0}', space=vmem, size = 0x400, scoped, tag = 'input window, operand 0, single buffered']
    #allocation3 [shape = 's32[1]{0}', space=sflag, size = 0x4, scoped, tag = 'scoped memory for tpu_custom_call.1']
    #allocation4 [shape = 's32[1]{0}', space=sflag, size = 0x4, scoped, tag = 'scoped memory for tpu_custom_call.1']
    #allocation5 [shape = 'u8[1024]{0}', space=vmem, size = 0x400, scoped, tag = 'input window, operand 1, single buffered']
    #allocation6 [shape = 's32[1]{0}', space=sflag, size = 0x4, scoped, tag = 'scoped memory for tpu_custom_call.1']
    #allocation7 [shape = 'u8[1024]{0}', space=vmem, size = 0x400, scoped, tag = 'output window, operand 0, single buffered']
    %9 = vsyncpa [#allocation3], 0
    %10 = vsyncpa [#allocation6], 0
    %11 = vsyncpa [#allocation4], 0
    // Predicated region
    $region2: #{tpu_custom_call.1} parent=1 // pred_check
      _
    $region3: #{tpu_custom_call.1} parent=1 // pred_check_branch
      %13 = sbr.rel (0) target = $region5
    $region4: #{tpu_custom_call.1} parent=1 // pred_region
      %s15 = ssub.s32 32, 32
      %16 = vsyncadd [#allocation3], %s15
      %s18 = sshll.u32 [#allocation2], 4
      %s19 = int_to_ptr.vmem [resolvable:$true] %s18
      %21 = dma.hbm_to_vmem [thread:$0]  %s0, 32, %s19, [#allocation3]
    $region5: #{tpu_custom_call.1} parent=1 // pred_fallthru
      _
    // Predicated region
    $region6: #{tpu_custom_call.1} parent=1 // pred_check
      _
    $region7: #{tpu_custom_call.1} parent=1 // pred_check_branch
      %23 = sbr.rel (0) target = $region9
    $region8: #{tpu_custom_call.1} parent=1 // pred_region
      %s25 = ssub.s32 32, 32
      %26 = vsyncadd [#allocation6], %s25
      %s28 = sshll.u32 [#allocation5], 4
      %s29 = int_to_ptr.vmem [resolvable:$true] %s28
      %31 = dma.hbm_to_vmem [thread:$0]  %s1, 32, %s29, [#allocation6]
    $region9: #{tpu_custom_call.1} parent=1 // pred_fallthru
      _
    // Predicated region
    $region10: #{tpu_custom_call.1} parent=1 // pred_check
      _
    $region11: #{tpu_custom_call.1} parent=1 // pred_check_branch
      %33 = sbr.rel (0) target = $region13
    $region12: #{tpu_custom_call.1} parent=1 // pred_region
      _
    $region13: #{tpu_custom_call.1} parent=1 // pred_fallthru
      _
    // Predicated region
    $region14: #{tpu_custom_call.1} parent=1 // pred_check
      _
    $region15: #{tpu_custom_call.1} parent=1 // pred_check_branch
      %35 = sbr.rel (0) target = $region17
    $region16: #{tpu_custom_call.1} parent=1 // pred_region
      _
    $region17: #{tpu_custom_call.1} parent=1 // pred_fallthru
      _
    // Predicated region
    $region18: #{tpu_custom_call.1} parent=1 // pred_check
      _
    $region19: #{tpu_custom_call.1} parent=1 // pred_check_branch
      %37 = sbr.rel (0) target = $region21
    $region20: #{tpu_custom_call.1} parent=1 // pred_region
      %38 = dma.done [#allocation3], 32
    $region21: #{tpu_custom_call.1} parent=1 // pred_fallthru
      _
    // Predicated region
    $region22: #{tpu_custom_call.1} parent=1 // pred_check
      _
    $region23: #{tpu_custom_call.1} parent=1 // pred_check_branch
      %40 = sbr.rel (0) target = $region25
    $region24: #{tpu_custom_call.1} parent=1 // pred_region
      %41 = dma.done [#allocation6], 32
    $region25: #{tpu_custom_call.1} parent=1 // pred_fallthru
      _
    %v42 = vld [vmem:[#allocation5] sm:$0x3]
    %v43 = vld [vmem:[#allocation2] sm:$0x3]
    %vm44 = vcmask 15360
    %v46 = vsel %vm44, %v42, 0
    %vm48 = vcmask 1041408
    %v50 = vsel %vm48, %v43, 0
    %52 = vmatprep.subr.mxu0 0.0
    %53 = vmatpush1.msra.mxu0 0.0
    %54 = vmatprep.subr.mxu0 0.0
    %55 = vmatpush1.msra.mxu0 0.0
    %56 = vmatprep.subr.mxu0 0.0
    %57 = vmatpush1.msra.mxu0 0.0
    %58 = vmatprep.subr.mxu0 0.0
    %59 = vmatpush1.msra.mxu0 0.0
    %60 = vmatprep.subr.mxu0 0.0
    %61 = vmatpush1.msra.mxu0 0.0
    %62 = vmatprep.subr.mxu0 0.0
    %63 = vmatpush1.msra.mxu0 0.0
    %64 = vmatprep.subr.mxu0 0.0
    %65 = vmatpush1.msra.mxu0 0.0
    %66 = vmatprep.subr.mxu0 0.0
    %67 = vmatpush1.msra.mxu0 0.0
    %68 = vmatprep.subr.mxu0 0.0
    %69 = vmatpush1.msra.mxu0 0.0
    %70 = vmatprep.subr.mxu0 0.0
    %71 = vmatpush1.msra.mxu0 0.0
    %72 = vmatprep.subr.mxu0 0.0
    %73 = vmatpush1.msra.mxu0 0.0
    %74 = vmatprep.subr.mxu0 0.0
    %75 = vmatpush1.msra.mxu0 0.0
    %76 = vmatprep.subr.mxu0 0.0
    %77 = vmatpush1.msra.mxu0 0.0
    %78 = vmatprep.subr.mxu0 0.0
    %79 = vmatpush1.msra.mxu0 0.0
    %80 = vmatprep.subr.mxu0 0.0
    %81 = vmatpush1.msra.mxu0 0.0
    %82 = vmatprep.subr.mxu0 0.0
    %83 = vmatpush1.msra.mxu0 %v50
    %84 = vmatprep.subr.mxu0 0.0
    %85 = vmatpush2.msra.mxu0 0.0
    %86 = vmatprep.subr.mxu0 0.0
    %87 = vmatpush2.msra.mxu0 0.0
    %88 = vmatprep.subr.mxu0 0.0
    %89 = vmatpush2.msra.mxu0 0.0
    %90 = vmatprep.subr.mxu0 0.0
    %91 = vmatpush2.msra.mxu0 0.0
    %92 = vmatprep.subr.mxu0 0.0
    %93 = vmatpush2.msra.mxu0 0.0
    %94 = vmatprep.subr.mxu0 0.0
    %95 = vmatpush2.msra.mxu0 0.0
    %96 = vmatprep.subr.mxu0 0.0
    %97 = vmatpush2.msra.mxu0 0.0
    %98 = vmatprep.subr.mxu0 0.0
    %99 = vmatpush2.msra.mxu0 0.0
    %100 = vmatprep.subr.mxu0 0.0
    %101 = vmatpush2.msra.mxu0 0.0
    %102 = vmatprep.subr.mxu0 0.0
    %103 = vmatpush2.msra.mxu0 0.0
    %104 = vmatprep.subr.mxu0 0.0
    %105 = vmatpush2.msra.mxu0 0.0
    %106 = vmatprep.subr.mxu0 0.0
    %107 = vmatpush2.msra.mxu0 0.0
    %108 = vmatprep.subr.mxu0 0.0
    %109 = vmatpush2.msra.mxu0 0.0
    %110 = vmatprep.subr.mxu0 0.0
    %111 = vmatpush2.msra.mxu0 0.0
    %112 = vmatprep.subr.mxu0 0.0
    %113 = vmatpush2.msra.mxu0 0.0
    %114 = vmatprep.subr.mxu0 0.0
    %115 = vmatpush2.msra.mxu0 0.0
    %116 = vmatprep.mubr.f32.mxu0 0.0
    %117 = vmatmul.mubr.f32.gmra.mxu0 %v46
    %v118 = vpop.f32.mrf.mxu0
    %v119 = vadd.f32 0.0, %v118
    %v120 = vpop.f32.mrf.mxu0
    %121 = vdwg.mxu0
    %v122 = vld [vmem:[%s2] sm:$0x3]
    %v123 = vld [vmem:[%s3] sm:$0x3]
    %v125 = vsel %vm44, %v119, 0
    %v128 = vsel %vm48, %v122, 0
    %130 = vmatprep.subr.mxu0 0.0
    %131 = vmatpush1.msra.mxu0 0.0
    %132 = vmatprep.subr.mxu0 0.0
    %133 = vmatpush1.msra.mxu0 0.0
    %134 = vmatprep.subr.mxu0 0.0
    %135 = vmatpush1.msra.mxu0 0.0
    %136 = vmatprep.subr.mxu0 0.0
    %137 = vmatpush1.msra.mxu0 0.0
    %138 = vmatprep.subr.mxu0 0.0
    %139 = vmatpush1.msra.mxu0 0.0
    %140 = vmatprep.subr.mxu0 0.0
    %141 = vmatpush1.msra.mxu0 0.0
    %142 = vmatprep.subr.mxu0 0.0
    %143 = vmatpush1.msra.mxu0 0.0
    %144 = vmatprep.subr.mxu0 0.0
    %145 = vmatpush1.msra.mxu0 0.0
    %146 = vmatprep.subr.mxu0 0.0
    %147 = vmatpush1.msra.mxu0 0.0
    %148 = vmatprep.subr.mxu0 0.0
    %149 = vmatpush1.msra.mxu0 0.0
    %150 = vmatprep.subr.mxu0 0.0
    %151 = vmatpush1.msra.mxu0 0.0
    %152 = vmatprep.subr.mxu0 0.0
    %153 = vmatpush1.msra.mxu0 0.0
    %154 = vmatprep.subr.mxu0 0.0
    %155 = vmatpush1.msra.mxu0 0.0
    %156 = vmatprep.subr.mxu0 0.0
    %157 = vmatpush1.msra.mxu0 0.0
    %158 = vmatprep.subr.mxu0 0.0
    %159 = vmatpush1.msra.mxu0 0.0
    %160 = vmatprep.subr.mxu0 0.0
    %161 = vmatpush1.msra.mxu0 %v128
    %162 = vmatprep.subr.mxu0 0.0
    %163 = vmatpush2.msra.mxu0 0.0
    %164 = vmatprep.subr.mxu0 0.0
    %165 = vmatpush2.msra.mxu0 0.0
    %166 = vmatprep.subr.mxu0 0.0
    %167 = vmatpush2.msra.mxu0 0.0
    %168 = vmatprep.subr.mxu0 0.0
    %169 = vmatpush2.msra.mxu0 0.0
    %170 = vmatprep.subr.mxu0 0.0
    %171 = vmatpush2.msra.mxu0 0.0
    %172 = vmatprep.subr.mxu0 0.0
    %173 = vmatpush2.msra.mxu0 0.0
    %174 = vmatprep.subr.mxu0 0.0
    %175 = vmatpush2.msra.mxu0 0.0
    %176 = vmatprep.subr.mxu0 0.0
    %177 = vmatpush2.msra.mxu0 0.0
    %178 = vmatprep.subr.mxu0 0.0
    %179 = vmatpush2.msra.mxu0 0.0
    %180 = vmatprep.subr.mxu0 0.0
    %181 = vmatpush2.msra.mxu0 0.0
    %182 = vmatprep.subr.mxu0 0.0
    %183 = vmatpush2.msra.mxu0 0.0
    %184 = vmatprep.subr.mxu0 0.0
    %185 = vmatpush2.msra.mxu0 0.0
    %186 = vmatprep.subr.mxu0 0.0
    %187 = vmatpush2.msra.mxu0 0.0
    %188 = vmatprep.subr.mxu0 0.0
    %189 = vmatpush2.msra.mxu0 0.0
    %190 = vmatprep.subr.mxu0 0.0
    %191 = vmatpush2.msra.mxu0 0.0
    %192 = vmatprep.subr.mxu0 0.0
    %193 = vmatpush2.msra.mxu0 0.0
    %194 = vmatprep.mubr.f32.mxu0 0.0
    %195 = vmatmul.mubr.f32.gmra.mxu0 %v125
    %v196 = vpop.f32.mrf.mxu0
    %v197 = vadd.f32 %v123, %v196
    %v198 = vpop.f32.mrf.mxu0
    %199 = vdwg.mxu0
    %vm200 = vcmask 9216
    %201 = vst.msk [vmem:[#allocation7] sm:$0x3] %vm200, %v197
    // Predicated region
    $region26: #{tpu_custom_call.1} parent=1 // pred_check
      _
    $region27: #{tpu_custom_call.1} parent=1 // pred_check_branch
      %203 = sbr.rel (0) target = $region29
    $region28: #{tpu_custom_call.1} parent=1 // pred_region
      %s205 = ssub.s32 32, 32
      %206 = vsyncadd [#allocation4], %s205
      %s208 = sshll.u32 [#allocation7], 4
      %s209 = int_to_ptr.vmem [resolvable:$true] %s208
      %211 = dma.vmem_to_hbm [thread:$0]  %s209, 32, %s4, [#allocation4]
    $region29: #{tpu_custom_call.1} parent=1 // pred_fallthru
      _
    // Predicated region
    $region30: #{tpu_custom_call.1} parent=1 // pred_check
      _
    $region31: #{tpu_custom_call.1} parent=1 // pred_check_branch
      %213 = sbr.rel (0) target = $region33
    $region32: #{tpu_custom_call.1} parent=1 // pred_region
      %214 = dma.done [#allocation4], 32
    $region33: #{tpu_custom_call.1} parent=1 // pred_fallthru
      _
    %215 = vsyncpa [#allocation3], 1
    %216 = vsyncpa [#allocation6], 1
    %217 = vsyncpa [#allocation4], 1

</llo_original>
